<compile_context>
chip_gen: v7x
topology: tpu7x:2x2x1
jax: 0.10.0
libtpu: 0.0.40
codegen_flags: <defaults>
</compile_context>

<pallas_src>
import jax
import jax.numpy as jnp
from jax import lax
from jax.experimental import pallas as pl
from jax.experimental.pallas import tpu as pltpu

BIG = 1e10
INT32_MAX = 0x7FFFFFFF


def _local_grouper_kernel(xyz_t_ref, xyz_ref, pts_ref,
                          new_xyz_ref, new_pts_ref,
                          sel_ref, oneh_ref):
    f32 = jnp.float32
    xyz_t = xyz_t_ref[0].astype(f32)     # (3, N)  lane-major copy of the cloud
    xyz_nt = xyz_ref[0].astype(f32)      # (N, 3)  row-major copy (for gathers)
    pts = pts_ref[0].astype(f32)         # (N, D)

    N = xyz_t.shape[1]
    D = pts.shape[1]
    S = new_xyz_ref.shape[1]
    K = new_pts_ref.shape[2] // (2 * D)

    lane_iota = lax.broadcasted_iota(jnp.int32, (1, N), 1)       # (1, N)
    rev_iota = (N - 1) - lane_iota                               # (1, N)
    idx_bits = max(1, (N - 1).bit_length())
    idx_mask = (1 << idx_bits) - 1
    hi_mask = jnp.int32(~idx_mask)

    # ---------------- farthest point sampling (serial over S) ----------------
    # TODO(synk): torch.randint start replaced by deterministic start index 0.
    def fps_body(i, carry):
        distance, far = carry                                     # (1,N), i32
        onehot = (lane_iota == far).astype(f32)                   # (1, N)
        sel_ref[pl.ds(i, 1), :] = onehot                          # record row i
        # centroid of the selected point via masked lane reduce -> (3, 1)
        cen = jnp.sum(xyz_t * onehot, axis=1, keepdims=True)
        diff = xyz_t - cen                                        # (3, N)
        dist = jnp.sum(diff * diff, axis=0, keepdims=True)        # (1, N) >= 0
        distance = jnp.minimum(distance, dist)
        # fused max + first-argmax: pack distance bits (high) + reversed index
        # (low) into one int32 key (valid because distance >= 0, so f32 bit
        # order == numeric order). Ties / sub-ulp quantization differences are
        # benign for FPS (torch start is random anyway).
        bits = pltpu.bitcast(distance, jnp.int32)
        key = (bits & hi_mask) | rev_iota
        best = jnp.max(key)
        far = jnp.int32(N - 1) - (best & jnp.int32(idx_mask))
        return distance, far

    distance0 = jnp.full((1, N), BIG, dtype=f32)
    lax.fori_loop(0, S, fps_body, (distance0, jnp.int32(0)))

    # gather sampled centroid xyz / features via one-hot matmuls (MXU gather)
    sel = sel_ref[...]                                            # (S, N)
    new_xyz = jnp.dot(sel, xyz_nt, preferred_element_type=f32)    # (S, 3)
    new_ctr = jnp.dot(sel, pts, preferred_element_type=f32)       # (S, D)
    new_xyz_ref[0] = new_xyz.astype(new_xyz_ref.dtype)

    # ------------- kNN: full squared-distance matrix in ONE matmul -----------
    # sqr[s,i] = |new_xyz_s|^2 + |xyz_i|^2 - 2 * new_xyz_s . xyz_i
    x_sq = jnp.sum(xyz_t * xyz_t, axis=0, keepdims=True)          # (1, N)
    nx_sq = jnp.sum(new_xyz * new_xyz, axis=-1, keepdims=True)    # (S, 1)
    aug_lhs = jnp.concatenate(
        [new_xyz, nx_sq, jnp.ones((S, 1), f32)], axis=-1)         # (S, 5)
    aug_rhs = jnp.concatenate(
        [-2.0 * xyz_t, jnp.ones((1, N), f32), x_sq], axis=0)      # (5, N)
    sqr = jnp.dot(aug_lhs, aug_rhs, preferred_element_type=f32)   # (S, N)

    # iterative k-smallest selection with a packed int32 key per entry:
    # high bits = f32 distance bits (clamped >= 0 so bit order == numeric
    # order), low bits = lane index.  Keys are unique per row, so each step is
    # one lane MIN reduction and an equality compare; selected lanes are then
    # retired by setting their key to INT32_MAX.  Same index set as
    # torch.topk(largest=False) up to exact-tie / sub-ulp quantization.
    sqr = jnp.maximum(sqr, 0.0)                                   # kill fp -eps
    iota_sn = lax.broadcasted_iota(jnp.int32, (S, N), 1)
    key0 = (pltpu.bitcast(sqr, jnp.int32) & hi_mask) | iota_sn    # (S, N)

    def knn_body(k, key):
        best = jnp.min(key, axis=-1, keepdims=True)               # (S, 1)
        hit = key == best                                         # one-hot rows
        oneh_ref[pl.ds(k * S, S), :] = hit.astype(f32)
        return jnp.where(hit, jnp.int32(INT32_MAX), key)

    lax.fori_loop(0, K, knn_body, key0, unroll=True)

    # single batched gather for all K neighbor sets: (K*S, N) @ (N, D)
    grouped = jnp.dot(oneh_ref[...], pts,
                      preferred_element_type=f32)                 # (K*S, D)

    # assemble lane-dense (S, K*2D): per-k slot = [grouped_k - center | center]
    pieces = []
    for k in range(K):
        gk = grouped[k * S:(k + 1) * S, :]                        # (S, D)
        pieces.append(gk - new_ctr)
        pieces.append(new_ctr)
    out = jnp.concatenate(pieces, axis=-1)                        # (S, K*2D)
    new_pts_ref[0] = out.astype(new_pts_ref.dtype)


def local_grouper(xyz, points, groups, kneighbors):
    """xyz: [B, N, 3], points: [B, N, D] -> (new_xyz [B,S,3], new_points [B,S,K,2D])."""
    B, N, _ = xyz.shape
    D = points.shape[-1]
    S, K = int(groups), int(kneighbors)

    xyz_t = jnp.swapaxes(xyz, 1, 2)  # (B, 3, N) lane-major layout for the kernel

    out_shapes = (
        jax.ShapeDtypeStruct((B, S, 3), xyz.dtype),
        jax.ShapeDtypeStruct((B, S, K * 2 * D), points.dtype),   # lane-dense store
    )

    # rough VMEM budget: double-buffered inputs/outputs + scratch + temporaries
    est = 4 * (2 * (3 * N + N * 3 + N * D)
               + 2 * (S * 3 + S * K * 2 * D)
               + (S * N + K * S * N)
               + (K * S * N + 3 * S * N + 4 * S * K * D))
    vmem_limit = int(min(max(2 * est, 32 * 1024 * 1024), 64 * 1024 * 1024))

    new_xyz, new_pts_flat = pl.pallas_call(
        _local_grouper_kernel,
        out_shape=out_shapes,
        grid=(B,),
        in_specs=[
            pl.BlockSpec((1, 3, N), lambda b: (b, 0, 0)),
            pl.BlockSpec((1, N, 3), lambda b: (b, 0, 0)),
            pl.BlockSpec((1, N, D), lambda b: (b, 0, 0)),
        ],
        out_specs=(
            pl.BlockSpec((1, S, 3), lambda b: (b, 0, 0)),
            pl.BlockSpec((1, S, K * 2 * D), lambda b: (b, 0, 0)),
        ),
        scratch_shapes=[
            pltpu.VMEM((S, N), jnp.float32),        # FPS one-hot selection rows
            pltpu.VMEM((K * S, N), jnp.float32),    # stacked kNN one-hot rows
        ],
        compiler_params=pltpu.CompilerParams(
            dimension_semantics=("parallel",),
            vmem_limit_bytes=vmem_limit),
    )(xyz_t, xyz, points)

    return new_xyz, new_pts_flat.reshape(B, S, K, 2 * D)


if __name__ == "__main__":
    B, N, D = 2, 32, 8
    groups, kneighbors = 8, 4

    key = jax.random.PRNGKey(0)
    kx, kp = jax.random.split(key)
    xyz = jax.random.normal(kx, (B, N, 3), dtype=jnp.float32)
    points = jax.random.normal(kp, (B, N, D), dtype=jnp.float32)

    new_xyz, new_points = local_grouper(xyz, points, groups, kneighbors)
    jax.block_until_ready((new_xyz, new_points))

    assert new_xyz.shape == (B, groups, 3)
    assert new_points.shape == (B, groups, kneighbors, 2 * D)
    assert bool(jnp.all(jnp.isfinite(new_xyz)))
    assert bool(jnp.all(jnp.isfinite(new_points)))
    # structural sanity: the nearest neighbor of each centroid is itself, so the
    # first neighbor slot's relative feature must be ~0.
    self_rel = new_points[:, :, 0, :D]
    assert float(jnp.max(jnp.abs(self_rel))) < 1e-2

    print("KERNEL_OK")
</pallas_src>

<mosaic_0001>
module attributes {stable_mosaic.version = 11 : i64} {
  func.func @_local_grouper_kernel(%arg0: i32, %arg1: memref<1x3x32xf32, #tpu.memory_space<vmem>>, %arg2: memref<1x32x3xf32, #tpu.memory_space<vmem>>, %arg3: memref<1x32x8xf32, #tpu.memory_space<vmem>>, %arg4: memref<1x8x3xf32, #tpu.memory_space<vmem>>, %arg5: memref<1x8x64xf32, #tpu.memory_space<vmem>>, %arg6: memref<8x32xf32, #tpu.memory_space<vmem>>, %arg7: memref<32x32xf32, #tpu.memory_space<vmem>>) attributes {dimension_semantics = [#tpu.dimension_semantics<parallel>], iteration_bounds = array<i64: 2>, scalar_prefetch = 0 : i64, scratch_operands = 2 : i64, tpu.core_type = #tpu.core_type<tc>, window_params = [{transform_indices = @transform_0, window_bounds = array<i64: 1, 3, 32>}, {transform_indices = @transform_1, window_bounds = array<i64: 1, 32, 3>}, {transform_indices = @transform_2, window_bounds = array<i64: 1, 32, 8>}, {transform_indices = @transform_3, window_bounds = array<i64: 1, 8, 3>}, {transform_indices = @transform_4, window_bounds = array<i64: 1, 8, 64>}]} {
    %c0 = arith.constant 0 : index
    %c0_0 = arith.constant 0 : index
    %c0_1 = arith.constant 0 : index
    %0 = vector.load %arg1[%c0, %c0_0, %c0_1] : memref<1x3x32xf32, #tpu.memory_space<vmem>>, vector<1x3x32xf32>
    %1 = vector.shape_cast %0 : vector<1x3x32xf32> to vector<3x32xf32>
    %c0_2 = arith.constant 0 : index
    %c0_3 = arith.constant 0 : index
    %c0_4 = arith.constant 0 : index
    %2 = vector.load %arg2[%c0_2, %c0_3, %c0_4] : memref<1x32x3xf32, #tpu.memory_space<vmem>>, vector<1x32x3xf32>
    %3 = vector.shape_cast %2 : vector<1x32x3xf32> to vector<32x3xf32>
    %c0_5 = arith.constant 0 : index
    %c0_6 = arith.constant 0 : index
    %c0_7 = arith.constant 0 : index
    %4 = vector.load %arg3[%c0_5, %c0_6, %c0_7] : memref<1x32x8xf32, #tpu.memory_space<vmem>>, vector<1x32x8xf32>
    %5 = vector.shape_cast %4 : vector<1x32x8xf32> to vector<32x8xf32>
    %6 = tpu.iota {dimensions = array<i32: 1>} : vector<1x32xi32>
    %c31_i32 = arith.constant 31 : i32
    %7 = vector.broadcast %c31_i32 : i32 to vector<1x32xi32>
    %8 = arith.subi %7, %6 : vector<1x32xi32>
    %cst = arith.constant 1.000000e+10 : f32
    %9 = vector.broadcast %cst : f32 to vector<1x32xf32>
    %c-32_i32 = arith.constant -32 : i32
    %c0_i32 = arith.constant 0 : i32
    %c0_i32_8 = arith.constant 0 : i32
    %c8_i32 = arith.constant 8 : i32
    %10 = arith.addi %c0_i32_8, %c8_i32 : i32
    %c1_i32 = arith.constant 1 : i32
    %11:2 = scf.for %arg8 = %c0_i32_8 to %10 step %c1_i32 iter_args(%arg9 = %9, %arg10 = %c0_i32) -> (vector<1x32xf32>, i32)  : i32 {
      %96 = vector.broadcast %arg10 : i32 to vector<1x32xi32>
      %97 = arith.cmpi eq, %6, %96 : vector<1x32xi32>
      %98 = arith.extui %97 : vector<1x32xi1> to vector<1x32xi32>
      %99 = arith.sitofp %98 : vector<1x32xi32> to vector<1x32xf32>
      %100 = arith.index_cast %arg8 : i32 to index
      %c0_48 = arith.constant 0 : index
      %101 = vector.load %arg6[%100, %c0_48] : memref<8x32xf32, #tpu.memory_space<vmem>>, vector<1x32xf32>
      tpu.vector_store %arg6[%100, %c0_48], %99 {strides = array<i32>} : memref<8x32xf32, #tpu.memory_space<vmem>>, vector<1x32xf32>,
      %102 = vector.broadcast %99 : vector<1x32xf32> to vector<3x32xf32>
      %103 = arith.mulf %1, %102 : vector<3x32xf32>
      %cst_49 = arith.constant dense<0.000000e+00> : vector<3xf32>
      %104 = vector.multi_reduction <add>, %103, %cst_49 [1] : vector<3x32xf32> to vector<3xf32>
      %105 = vector.shape_cast %104 : vector<3xf32> to vector<3x1xf32>
      %106 = vector.broadcast %105 : vector<3x1xf32> to vector<3x32xf32>
      %107 = arith.subf %1, %106 : vector<3x32xf32>
      %108 = arith.mulf %107, %107 : vector<3x32xf32>
      %cst_50 = arith.constant dense<0.000000e+00> : vector<32xf32>
      %109 = vector.multi_reduction <add>, %108, %cst_50 [0] : vector<3x32xf32> to vector<32xf32>
      %110 = vector.shape_cast %109 : vector<32xf32> to vector<1x32xf32>
      %111 = arith.minimumf %arg9, %110 : vector<1x32xf32>
      %112 = tpu.bitcast %111 : vector<1x32xf32> -> vector<1x32xi32>
      %113 = vector.broadcast %c-32_i32 : i32 to vector<1x32xi32>
      %114 = arith.andi %112, %113 : vector<1x32xi32>
      %115 = arith.ori %114, %8 : vector<1x32xi32>
      %116 = vector.shape_cast %115 : vector<1x32xi32> to vector<1x1x32xi32>
      %cst_51 = arith.constant dense<-2147483648> : vector<1xi32>
      %117 = vector.multi_reduction <maxsi>, %116, %cst_51 [1, 2] : vector<1x1x32xi32> to vector<1xi32>
      %118 = vector.shape_cast %117 : vector<1xi32> to vector<1x1x1xi32>
      %119 = vector.extract %118[0, 0, 0] : i32 from vector<1x1x1xi32>
      %c31_i32_52 = arith.constant 31 : i32
      %120 = arith.andi %119, %c31_i32_52 : i32
      %c31_i32_53 = arith.constant 31 : i32
      %121 = arith.subi %c31_i32_53, %120 : i32
      scf.yield %111, %121 : vector<1x32xf32>, i32
    }
    %c8_i32_9 = arith.constant 8 : i32
    %c0_10 = arith.constant 0 : index
    %c0_11 = arith.constant 0 : index
    %12 = vector.load %arg6[%c0_10, %c0_11] : memref<8x32xf32, #tpu.memory_space<vmem>>, vector<8x32xf32>
    %cst_12 = arith.constant dense<0.000000e+00> : vector<8x3xf32>
    %13 = tpu.matmul %12, %3, %cst_12 {dimension_numbers = #tpu.dot_dimension_numbers<[1], [0], [0], [1], [0, 0, 1, 1], [], []>} : vector<8x32xf32>, vector<32x3xf32>, vector<8x3xf32> -> vector<8x3xf32>
    %cst_13 = arith.constant dense<0.000000e+00> : vector<8x8xf32>
    %14 = tpu.matmul %12, %5, %cst_13 {dimension_numbers = #tpu.dot_dimension_numbers<[1], [0], [0], [1], [0, 0, 1, 1], [], []>} : vector<8x32xf32>, vector<32x8xf32>, vector<8x8xf32> -> vector<8x8xf32>
    %c0_14 = arith.constant 0 : index
    %c0_15 = arith.constant 0 : index
    %c0_16 = arith.constant 0 : index
    %15 = vector.load %arg4[%c0_14, %c0_15, %c0_16] : memref<1x8x3xf32, #tpu.memory_space<vmem>>, vector<1x8x3xf32>
    %16 = vector.shape_cast %15 : vector<1x8x3xf32> to vector<8x3xf32>
    %17 = vector.shape_cast %13 : vector<8x3xf32> to vector<1x8x3xf32>
    tpu.vector_store %arg4[%c0_14, %c0_15, %c0_16], %17 {strides = array<i32>} : memref<1x8x3xf32, #tpu.memory_space<vmem>>, vector<1x8x3xf32>,
    %18 = arith.mulf %1, %1 : vector<3x32xf32>
    %cst_17 = arith.constant dense<0.000000e+00> : vector<32xf32>
    %19 = vector.multi_reduction <add>, %18, %cst_17 [0] : vector<3x32xf32> to vector<32xf32>
    %20 = vector.shape_cast %19 : vector<32xf32> to vector<1x32xf32>
    %21 = arith.mulf %13, %13 : vector<8x3xf32>
    %cst_18 = arith.constant dense<0.000000e+00> : vector<8xf32>
    %22 = vector.multi_reduction <add>, %21, %cst_18 [1] : vector<8x3xf32> to vector<8xf32>
    %23 = vector.shape_cast %22 : vector<8xf32> to vector<8x1xf32>
    %cst_19 = arith.constant 1.000000e+00 : f32
    %24 = vector.broadcast %cst_19 : f32 to vector<8x1xf32>
    %25 = tpu.concatenate %13, %23, %24 in 1 : vector<8x3xf32>, vector<8x1xf32>, vector<8x1xf32> -> vector<8x5xf32>
    %cst_20 = arith.constant -2.000000e+00 : f32
    %26 = vector.broadcast %cst_20 : f32 to vector<3x32xf32>
    %27 = arith.mulf %26, %1 : vector<3x32xf32>
    %cst_21 = arith.constant 1.000000e+00 : f32
    %28 = vector.broadcast %cst_21 : f32 to vector<1x32xf32>
    %29 = tpu.concatenate %27, %28, %20 in 0 : vector<3x32xf32>, vector<1x32xf32>, vector<1x32xf32> -> vector<5x32xf32>
    %cst_22 = arith.constant dense<0.000000e+00> : vector<8x32xf32>
    %30 = tpu.matmul %25, %29, %cst_22 {dimension_numbers = #tpu.dot_dimension_numbers<[1], [0], [0], [1], [0, 0, 1, 1], [], []>} : vector<8x5xf32>, vector<5x32xf32>, vector<8x32xf32> -> vector<8x32xf32>
    %cst_23 = arith.constant 0.000000e+00 : f32
    %31 = vector.broadcast %cst_23 : f32 to vector<8x32xf32>
    %32 = arith.maximumf %30, %31 : vector<8x32xf32>
    %33 = tpu.iota {dimensions = array<i32: 1>} : vector<8x32xi32>
    %34 = tpu.bitcast %32 : vector<8x32xf32> -> vector<8x32xi32>
    %c-32_i32_24 = arith.constant -32 : i32
    %35 = vector.broadcast %c-32_i32_24 : i32 to vector<8x32xi32>
    %36 = arith.andi %34, %35 : vector<8x32xi32>
    %37 = arith.ori %36, %33 : vector<8x32xi32>
    %c0_i32_25 = arith.constant 0 : i32
    %cst_26 = arith.constant dense<2147483647> : vector<8xi32>
    %38 = vector.multi_reduction <minsi>, %37, %cst_26 [1] : vector<8x32xi32> to vector<8xi32>
    %39 = vector.shape_cast %38 : vector<8xi32> to vector<8x1xi32>
    %40 = vector.broadcast %39 : vector<8x1xi32> to vector<8x32xi32>
    %41 = arith.cmpi eq, %37, %40 : vector<8x32xi32>
    %42 = arith.extui %41 : vector<8x32xi1> to vector<8x32xi32>
    %43 = arith.sitofp %42 : vector<8x32xi32> to vector<8x32xf32>
    %c8_i32_27 = arith.constant 8 : i32
    %44 = arith.muli %c0_i32_25, %c8_i32_27 : i32
    %45 = arith.index_cast %44 : i32 to index
    %c0_28 = arith.constant 0 : index
    %46 = vector.load %arg7[%45, %c0_28] : memref<32x32xf32, #tpu.memory_space<vmem>>, vector<8x32xf32>
    tpu.vector_store %arg7[%45, %c0_28], %43 {strides = array<i32>} : memref<32x32xf32, #tpu.memory_space<vmem>>, vector<8x32xf32>,
    %c2147483647_i32 = arith.constant 2147483647 : i32
    %47 = vector.broadcast %c2147483647_i32 : i32 to vector<8x32xi32>
    %48 = arith.select %41, %47, %37 : vector<8x32xi1>, vector<8x32xi32>
    %c1_i32_29 = arith.constant 1 : i32
    %cst_30 = arith.constant dense<2147483647> : vector<8xi32>
    %49 = vector.multi_reduction <minsi>, %48, %cst_30 [1] : vector<8x32xi32> to vector<8xi32>
    %50 = vector.shape_cast %49 : vector<8xi32> to vector<8x1xi32>
    %51 = vector.broadcast %50 : vector<8x1xi32> to vector<8x32xi32>
    %52 = arith.cmpi eq, %48, %51 : vector<8x32xi32>
    %53 = arith.extui %52 : vector<8x32xi1> to vector<8x32xi32>
    %54 = arith.sitofp %53 : vector<8x32xi32> to vector<8x32xf32>
    %c8_i32_31 = arith.constant 8 : i32
    %55 = arith.muli %c1_i32_29, %c8_i32_31 : i32
    %56 = arith.index_cast %55 : i32 to index
    %c0_32 = arith.constant 0 : index
    %57 = vector.load %arg7[%56, %c0_32] : memref<32x32xf32, #tpu.memory_space<vmem>>, vector<8x32xf32>
    tpu.vector_store %arg7[%56, %c0_32], %54 {strides = array<i32>} : memref<32x32xf32, #tpu.memory_space<vmem>>, vector<8x32xf32>,
    %c2147483647_i32_33 = arith.constant 2147483647 : i32
    %58 = vector.broadcast %c2147483647_i32_33 : i32 to vector<8x32xi32>
    %59 = arith.select %52, %58, %48 : vector<8x32xi1>, vector<8x32xi32>
    %c2_i32 = arith.constant 2 : i32
    %cst_34 = arith.constant dense<2147483647> : vector<8xi32>
    %60 = vector.multi_reduction <minsi>, %59, %cst_34 [1] : vector<8x32xi32> to vector<8xi32>
    %61 = vector.shape_cast %60 : vector<8xi32> to vector<8x1xi32>
    %62 = vector.broadcast %61 : vector<8x1xi32> to vector<8x32xi32>
    %63 = arith.cmpi eq, %59, %62 : vector<8x32xi32>
    %64 = arith.extui %63 : vector<8x32xi1> to vector<8x32xi32>
    %65 = arith.sitofp %64 : vector<8x32xi32> to vector<8x32xf32>
    %c8_i32_35 = arith.constant 8 : i32
    %66 = arith.muli %c2_i32, %c8_i32_35 : i32
    %67 = arith.index_cast %66 : i32 to index
    %c0_36 = arith.constant 0 : index
    %68 = vector.load %arg7[%67, %c0_36] : memref<32x32xf32, #tpu.memory_space<vmem>>, vector<8x32xf32>
    tpu.vector_store %arg7[%67, %c0_36], %65 {strides = array<i32>} : memref<32x32xf32, #tpu.memory_space<vmem>>, vector<8x32xf32>,
    %c2147483647_i32_37 = arith.constant 2147483647 : i32
    %69 = vector.broadcast %c2147483647_i32_37 : i32 to vector<8x32xi32>
    %70 = arith.select %63, %69, %59 : vector<8x32xi1>, vector<8x32xi32>
    %c3_i32 = arith.constant 3 : i32
    %cst_38 = arith.constant dense<2147483647> : vector<8xi32>
    %71 = vector.multi_reduction <minsi>, %70, %cst_38 [1] : vector<8x32xi32> to vector<8xi32>
    %72 = vector.shape_cast %71 : vector<8xi32> to vector<8x1xi32>
    %73 = vector.broadcast %72 : vector<8x1xi32> to vector<8x32xi32>
    %74 = arith.cmpi eq, %70, %73 : vector<8x32xi32>
    %75 = arith.extui %74 : vector<8x32xi1> to vector<8x32xi32>
    %76 = arith.sitofp %75 : vector<8x32xi32> to vector<8x32xf32>
    %c8_i32_39 = arith.constant 8 : i32
    %77 = arith.muli %c3_i32, %c8_i32_39 : i32
    %78 = arith.index_cast %77 : i32 to index
    %c0_40 = arith.constant 0 : index
    %79 = vector.load %arg7[%78, %c0_40] : memref<32x32xf32, #tpu.memory_space<vmem>>, vector<8x32xf32>
    tpu.vector_store %arg7[%78, %c0_40], %76 {strides = array<i32>} : memref<32x32xf32, #tpu.memory_space<vmem>>, vector<8x32xf32>,
    %c2147483647_i32_41 = arith.constant 2147483647 : i32
    %80 = vector.broadcast %c2147483647_i32_41 : i32 to vector<8x32xi32>
    %81 = arith.select %74, %80, %70 : vector<8x32xi1>, vector<8x32xi32>
    %c4_i32 = arith.constant 4 : i32
    %c0_42 = arith.constant 0 : index
    %c0_43 = arith.constant 0 : index
    %82 = vector.load %arg7[%c0_42, %c0_43] : memref<32x32xf32, #tpu.memory_space<vmem>>, vector<32x32xf32>
    %cst_44 = arith.constant dense<0.000000e+00> : vector<32x8xf32>
    %83 = tpu.matmul %82, %5, %cst_44 {dimension_numbers = #tpu.dot_dimension_numbers<[1], [0], [0], [1], [0, 0, 1, 1], [], []>} : vector<32x32xf32>, vector<32x8xf32>, vector<32x8xf32> -> vector<32x8xf32>
    %84 = vector.extract_strided_slice %83 {offsets = [0, 0], sizes = [8, 8], strides = [1, 1]} : vector<32x8xf32> to vector<8x8xf32>
    %85 = arith.subf %84, %14 : vector<8x8xf32>
    %86 = vector.extract_strided_slice %83 {offsets = [8, 0], sizes = [8, 8], strides = [1, 1]} : vector<32x8xf32> to vector<8x8xf32>
    %87 = arith.subf %86, %14 : vector<8x8xf32>
    %88 = vector.extract_strided_slice %83 {offsets = [16, 0], sizes = [8, 8], strides = [1, 1]} : vector<32x8xf32> to vector<8x8xf32>
    %89 = arith.subf %88, %14 : vector<8x8xf32>
    %90 = vector.extract_strided_slice %83 {offsets = [24, 0], sizes = [8, 8], strides = [1, 1]} : vector<32x8xf32> to vector<8x8xf32>
    %91 = arith.subf %90, %14 : vector<8x8xf32>
    %92 = tpu.concatenate %85, %14, %87, %14, %89, %14, %91, %14 in 1 : vector<8x8xf32>, vector<8x8xf32>, vector<8x8xf32>, vector<8x8xf32>, vector<8x8xf32>, vector<8x8xf32>, vector<8x8xf32>, vector<8x8xf32> -> vector<8x64xf32>
    %c0_45 = arith.constant 0 : index
    %c0_46 = arith.constant 0 : index
    %c0_47 = arith.constant 0 : index
    %93 = vector.load %arg5[%c0_45, %c0_46, %c0_47] : memref<1x8x64xf32, #tpu.memory_space<vmem>>, vector<1x8x64xf32>
    %94 = vector.shape_cast %93 : vector<1x8x64xf32> to vector<8x64xf32>
    %95 = vector.shape_cast %92 : vector<8x64xf32> to vector<1x8x64xf32>
    tpu.vector_store %arg5[%c0_45, %c0_46, %c0_47], %95 {strides = array<i32>} : memref<1x8x64xf32, #tpu.memory_space<vmem>>, vector<1x8x64xf32>,
    return
  }
  func.func @transform_0(%arg0: i32) -> (i32, i32, i32) {
    %c0_i32 = arith.constant 0 : i32
    %c0_i32_0 = arith.constant 0 : i32
    %c0_i32_1 = arith.constant 0 : i32
    return %arg0, %c0_i32, %c0_i32_0 : i32, i32, i32
  }
  func.func @transform_1(%arg0: i32) -> (i32, i32, i32) {
    %c0_i32 = arith.constant 0 : i32
    %c0_i32_0 = arith.constant 0 : i32
    %c0_i32_1 = arith.constant 0 : i32
    return %arg0, %c0_i32, %c0_i32_0 : i32, i32, i32
  }
  func.func @transform_2(%arg0: i32) -> (i32, i32, i32) {
    %c0_i32 = arith.constant 0 : i32
    %c0_i32_0 = arith.constant 0 : i32
    %c0_i32_1 = arith.constant 0 : i32
    return %arg0, %c0_i32, %c0_i32_0 : i32, i32, i32
  }
  func.func @transform_3(%arg0: i32) -> (i32, i32, i32) {
    %c0_i32 = arith.constant 0 : i32
    %c0_i32_0 = arith.constant 0 : i32
    %c0_i32_1 = arith.constant 0 : i32
    return %arg0, %c0_i32, %c0_i32_0 : i32, i32, i32
  }
  func.func @transform_4(%arg0: i32) -> (i32, i32, i32) {
    %c0_i32 = arith.constant 0 : i32
    %c0_i32_0 = arith.constant 0 : i32
    %c0_i32_1 = arith.constant 0 : i32
    return %arg0, %c0_i32, %c0_i32_0 : i32, i32, i32
  }
}

</mosaic_0001>

<llo_original>
// kernel: tpu_custom_call.1
$region0: #{tpu_custom_call.1}
  #allocation0 [shape = 'u32[]', space=smem, size = 0x4, offset = 0x4, fixed_abs, tag = 'smem constant byte address 0x4 - core index']
  #allocation1 [shape = 'u32[144,128]{1,0:T(1,128)}', space=vmem, size = 0x12000, scoped, tag = 'internal scratch']
  #allocation2 [shape = 'f32[8,32]{1,0:T(8,128)}', space=vmem, size = 0x1000, scoped, tag = 'scratch operand']
  #allocation3 [shape = 'f32[32,32]{1,0:T(8,128)}', space=vmem, size = 0x4000, scoped, tag = 'scratch operand']
  %s0 = inlined_call_operand.vmem [shape: f32[2,3,32], index: 0, kind: input, shape index: {}]
  %s1 = inlined_call_operand.vmem [shape: f32[2,32,3], index: 1, kind: input, shape index: {}]
  %s2 = inlined_call_operand.vmem [shape: f32[2,32,8], index: 2, kind: input, shape index: {}]
  %s3 = inlined_call_operand.vmem [shape: f32[2,8,3], index: 3, kind: output, shape index: {0}]
  %s4 = inlined_call_operand.hbm [shape: f32[2,8,64], index: 4, kind: output, shape index: {1}]
  %5 = xla_tuple %s3, %s4
  %s6 = sld [smem:[#allocation0]]
  $region60: #{tpu_custom_call.1} parent=0
    _
  %s8 = ssub.s32 1, %s6
  %s9 = scalar_select 0, %s8, %s6
  $region1: #{tpu_custom_call.1} parent=0
    #allocation4 [shape = 'u8[8192]{0}', space=vmem, size = 0x2000, scoped, tag = 'output window, operand 1']
    #allocation5 [shape = 's32[2]{0}', space=sflag, size = 0x8, scoped, tag = 'scoped memory for tpu_custom_call.1']
    %10 = vsyncpa [#allocation5], 0
    %s11 = scalar_lea.sflag [#allocation5], 1
    %12 = vsyncpa %s11, 0
    loop: start=0, step=1, limit=4
    $region2: #{tpu_custom_call.1} parent=1 // loop_pre_header
      _
    $region3: #{tpu_custom_call.1} parent=1 // loop_header
      %s14 = sphi 0, %s18
      %p15 = scmp.ge.s32.totalorder %s14, 4
      %s24 = sphi 0, %s26
      %s27 = sphi 0, %s24
      %s28 = sphi 0, %s27
      %s44 = sphi 0, %s28
      %s50 = sphi 0, %s52
      %s53 = sphi 0, %s50
      %s54 = sphi 0, %s53
      %s70 = sphi 0, %s54
      %s76 = sphi 0, %s78
      %s79 = sphi 0, %s76
      %s80 = sphi 0, %s79
      %s96 = sphi 0, %s80
      %s102 = sphi 0, %s104
      %s105 = sphi 0, %s102
      %s106 = sphi 0, %s105
      %s122 = sphi 0, %s106
      %s128 = sphi 0, %s130
      %s131 = sphi 0, %s128
      %s132 = sphi 0, %s131
      %s148 = sphi 0, %s132
    $region4: #{tpu_custom_call.1} parent=1 // loop_header_branch
      %17 = sbr.rel (%p15) target = $region8
    $region5: #{tpu_custom_call.1} parent=1 // loop_body
      %s19 = ssub.s32 %s14, 1
      %s20 = ssub.s32 %s14, 2
      %s21 = sadd.s32 %s14, 1
      %s22 = ssub.s32 %s14, %s21
      %p23 = scmp.eq.s32.totalorder %s22, 0
      %s25 = sadd.s32 %s24, 1
      %s26 = scalar_select %p23, %s24, %s25
      %p29 = pneg %p23
      %p30 = scmp.eq.s32.totalorder %s14, 1
      %p31 = por %p29, %p30
      %p32 = scmp.ne.s32.totalorder %s24, %s27
      %p33 = scmp.eq.s32.totalorder %s14, 0
      %p34 = por %p32, %p33
      %p35 = scmp.ne.s32.totalorder %s24, %s27
      %p36 = scmp.eq.s32.totalorder %s19, 1
      %p37 = por %p35, %p36
      %p38 = scmp.ne.s32.totalorder %s27, %s28
      %p39 = scmp.eq.s32.totalorder %s19, 0
      %p40 = por %p38, %p39
      %p41 = scmp.ne.s32.totalorder %s27, %s28
      %p42 = scmp.eq.s32.totalorder %s20, 1
      %p43 = por %p41, %p42
      %p45 = scmp.ne.s32.totalorder %s28, %s44
      %p46 = scmp.eq.s32.totalorder %s20, 0
      %p47 = por %p45, %p46
      %s48 = ssub.s32 %s14, %s21
      %p49 = scmp.eq.s32.totalorder %s48, 0
      %s51 = sadd.s32 %s50, 1
      %s52 = scalar_select %p49, %s50, %s51
      %p55 = pneg %p49
      %p56 = scmp.eq.s32.totalorder %s14, 1
      %p57 = por %p55, %p56
      %p58 = scmp.ne.s32.totalorder %s50, %s53
      %p59 = scmp.eq.s32.totalorder %s14, 0
      %p60 = por %p58, %p59
      %p61 = scmp.ne.s32.totalorder %s50, %s53
      %p62 = scmp.eq.s32.totalorder %s19, 1
      %p63 = por %p61, %p62
      %p64 = scmp.ne.s32.totalorder %s53, %s54
      %p65 = scmp.eq.s32.totalorder %s19, 0
      %p66 = por %p64, %p65
      %p67 = scmp.ne.s32.totalorder %s53, %s54
      %p68 = scmp.eq.s32.totalorder %s20, 1
      %p69 = por %p67, %p68
      %p71 = scmp.ne.s32.totalorder %s54, %s70
      %p72 = scmp.eq.s32.totalorder %s20, 0
      %p73 = por %p71, %p72
      %s74 = ssub.s32 %s14, %s21
      %p75 = scmp.eq.s32.totalorder %s74, 0
      %s77 = sadd.s32 %s76, 1
      %s78 = scalar_select %p75, %s76, %s77
      %p81 = pneg %p75
      %p82 = scmp.eq.s32.totalorder %s14, 1
      %p83 = por %p81, %p82
      %p84 = scmp.ne.s32.totalorder %s76, %s79
      %p85 = scmp.eq.s32.totalorder %s14, 0
      %p86 = por %p84, %p85
      %p87 = scmp.ne.s32.totalorder %s76, %s79
      %p88 = scmp.eq.s32.totalorder %s19, 1
      %p89 = por %p87, %p88
      %p90 = scmp.ne.s32.totalorder %s79, %s80
      %p91 = scmp.eq.s32.totalorder %s19, 0
      %p92 = por %p90, %p91
      %p93 = scmp.ne.s32.totalorder %s79, %s80
      %p94 = scmp.eq.s32.totalorder %s20, 1
      %p95 = por %p93, %p94
      %p97 = scmp.ne.s32.totalorder %s80, %s96
      %p98 = scmp.eq.s32.totalorder %s20, 0
      %p99 = por %p97, %p98
      %s100 = ssub.s32 %s14, %s21
      %p101 = scmp.eq.s32.totalorder %s100, 0
      %s103 = sadd.s32 %s102, 1
      %s104 = scalar_select %p101, %s102, %s103
      %p107 = pneg %p101
      %p108 = scmp.eq.s32.totalorder %s14, 1
      %p109 = por %p107, %p108
      %p110 = scmp.ne.s32.totalorder %s102, %s105
      %p111 = scmp.eq.s32.totalorder %s14, 0
      %p112 = por %p110, %p111
      %p113 = scmp.ne.s32.totalorder %s102, %s105
      %p114 = scmp.eq.s32.totalorder %s19, 1
      %p115 = por %p113, %p114
      %p116 = scmp.ne.s32.totalorder %s105, %s106
      %p117 = scmp.eq.s32.totalorder %s19, 0
      %p118 = por %p116, %p117
      %p119 = scmp.ne.s32.totalorder %s105, %s106
      %p120 = scmp.eq.s32.totalorder %s20, 1
      %p121 = por %p119, %p120
      %p123 = scmp.ne.s32.totalorder %s106, %s122
      %p124 = scmp.eq.s32.totalorder %s20, 0
      %p125 = por %p123, %p124
      %s126 = ssub.s32 %s14, %s21
      %p127 = scmp.eq.s32.totalorder %s126, 0
      %s129 = sadd.s32 %s128, 1
      %s130 = scalar_select %p127, %s128, %s129
      %p133 = pneg %p127
      %p134 = scmp.eq.s32.totalorder %s14, 1
      %p135 = por %p133, %p134
      %p136 = scmp.ne.s32.totalorder %s128, %s131
      %p137 = scmp.eq.s32.totalorder %s14, 0
      %p138 = por %p136, %p137
      %p139 = scmp.ne.s32.totalorder %s128, %s131
      %p140 = scmp.eq.s32.totalorder %s19, 1
      %p141 = por %p139, %p140
      %p142 = scmp.ne.s32.totalorder %s131, %s132
      %p143 = scmp.eq.s32.totalorder %s19, 0
      %p144 = por %p142, %p143
      %p145 = scmp.ne.s32.totalorder %s131, %s132
      %p146 = scmp.eq.s32.totalorder %s20, 1
      %p147 = por %p145, %p146
      %p149 = scmp.ne.s32.totalorder %s132, %s148
      %p150 = scmp.eq.s32.totalorder %s20, 0
      %p151 = por %p149, %p150
      %p152 = scmp.le.s32.totalorder 1, %s14
      %p153 = scmp.lt.s32.totalorder %s14, 3
      %p154 = pnand %p152, %p153
      %p155 = pneg %p154
      // Predicated region
      $region9: #{tpu_custom_call.1} parent=5 // pred_check
        _
      $region10: #{tpu_custom_call.1} parent=5 // pred_check_branch
        %157 = sbr.rel (%p154) target = $region12
      $region11: #{tpu_custom_call.1} parent=5 // pred_region
        %s158 = ssub.s32 %s14, 1
      $region12: #{tpu_custom_call.1} parent=5 // pred_fallthru
        _
      %p159 = scmp.lt.s32.totalorder %s14, 2
      // Predicated region
      $region13: #{tpu_custom_call.1} parent=5 // pred_check
        %p160 = pneg %p159
      $region14: #{tpu_custom_call.1} parent=5 // pred_check_branch
        %162 = sbr.rel (%p160) target = $region16
      $region15: #{tpu_custom_call.1} parent=5 // pred_region
        // Predicated region
        $region17: #{tpu_custom_call.1} parent=15 // pred_check
          %p163 = pneg %p34
        $region18: #{tpu_custom_call.1} parent=15 // pred_check_branch
          %165 = sbr.rel (%p163) target = $region20
        $region19: #{tpu_custom_call.1} parent=15 // pred_region
          %p166 = scmp.lt.s32.totalorder %s14, 1
          %s167 = scalar_select %p166, %s14, 1
          %s168 = smul.addr %s167, 4
          %s169 = scalar_lea.vmem %s0, %s168
        $region20: #{tpu_custom_call.1} parent=15 // pred_fallthru
          _
        // Predicated region
        $region21: #{tpu_custom_call.1} parent=15 // pred_check
          %p170 = pneg %p60
        $region22: #{tpu_custom_call.1} parent=15 // pred_check_branch
          %172 = sbr.rel (%p170) target = $region24
        $region23: #{tpu_custom_call.1} parent=15 // pred_region
          %p173 = scmp.lt.s32.totalorder %s14, 1
          %s174 = scalar_select %p173, %s14, 1
          %s175 = smul.addr %s174, 4
          %s176 = smul.addr %s175, 8
          %s177 = scalar_lea.vmem %s1, %s176
        $region24: #{tpu_custom_call.1} parent=15 // pred_fallthru
          _
        // Predicated region
        $region25: #{tpu_custom_call.1} parent=15 // pred_check
          %p178 = pneg %p86
        $region26: #{tpu_custom_call.1} parent=15 // pred_check_branch
          %180 = sbr.rel (%p178) target = $region28
        $region27: #{tpu_custom_call.1} parent=15 // pred_region
          %p181 = scmp.lt.s32.totalorder %s14, 1
          %s182 = scalar_select %p181, %s14, 1
          %s183 = smul.addr %s182, 4
          %s184 = smul.addr %s183, 8
          %s185 = scalar_lea.vmem %s2, %s184
        $region28: #{tpu_custom_call.1} parent=15 // pred_fallthru
          _
      $region16: #{tpu_custom_call.1} parent=5 // pred_fallthru
        _
      %p186 = scmp.le.s32.totalorder 1, %s14
      %p187 = scmp.lt.s32.totalorder %s14, 3
      %p188 = pnand %p186, %p187
      %p189 = pneg %p188
      // Predicated region
      $region29: #{tpu_custom_call.1} parent=5 // pred_check
        _
      $region30: #{tpu_custom_call.1} parent=5 // pred_check_branch
        %191 = sbr.rel (%p188) target = $region32
      $region31: #{tpu_custom_call.1} parent=5 // pred_region
        %s192 = ssub.s32 %s14, 1
        %p193 = scmp.lt.s32.totalorder %s19, 1
        %s194 = scalar_select %p193, %s19, 1
        %s195 = smul.addr %s194, 4
        %s196 = scalar_lea.vmem %s0, %s195
        %p197 = pneg %p40
        %p198 = pneg %p37
        %p199 = scmp.lt.s32.totalorder %s19, 1
        %s200 = scalar_select %p199, %s19, 1
        %s201 = smul.addr %s200, 4
        %s202 = smul.addr %s201, 8
        %s203 = scalar_lea.vmem %s1, %s202
        %p204 = pneg %p66
        %p205 = pneg %p63
        %p206 = scmp.lt.s32.totalorder %s19, 1
        %s207 = scalar_select %p206, %s19, 1
        %s208 = smul.addr %s207, 4
        %s209 = smul.addr %s208, 8
        %s210 = scalar_lea.vmem %s2, %s209
        %p211 = pneg %p92
        %p212 = pneg %p89
        %p213 = pneg %p118
        %p214 = pneg %p115
        %p215 = scmp.lt.s32.totalorder %s19, 1
        %s216 = scalar_select %p215, %s19, 1
        %s217 = smul.addr %s216, 8
        %s218 = scalar_lea.vmem %s3, %s217
        %p219 = pneg %p144
        %p220 = pneg %p141
        %s221 = sand.u32 %s131, 1
        %s222 = scalar_lea.sflag [#allocation5], %s221
        %s223 = sand.u32 %s131, 1
        %s224 = smul.addr %s223, 8
        %s225 = scalar_lea.vmem [#allocation4], %s224
        %p226 = scmp.lt.s32.totalorder %s19, 1
        %s227 = scalar_select %p226, %s19, 1
        %s228 = smul.addr %s227, 4
        %s229 = scalar_lea.vmem %s0, %s228
        %p230 = scmp.lt.s32.totalorder %s19, 1
        %s231 = scalar_select %p230, %s19, 1
        %s232 = smul.addr %s231, 4
        %s233 = smul.addr %s232, 8
        %s234 = scalar_lea.vmem %s1, %s233
        %p235 = scmp.lt.s32.totalorder %s19, 1
        %s236 = scalar_select %p235, %s19, 1
        %s237 = smul.addr %s236, 4
        %s238 = smul.addr %s237, 8
        %s239 = scalar_lea.vmem %s2, %s238
        %p240 = scmp.lt.s32.totalorder %s19, 1
        %s241 = scalar_select %p240, %s19, 1
        %s242 = smul.addr %s241, 8
        %s243 = scalar_lea.vmem %s3, %s242
        %v244 = vld [vmem:[%s229] sm:$0x7]
        %v245 = vld [vmem:[%s234] sm:$0xff]
        %v246 = vld [vmem:[%s234 + $0x8] sm:$0xff]
        %v247 = vld [vmem:[%s234 + $0x10] sm:$0xff]
        %v248 = vld [vmem:[%s234 + $0x18] sm:$0xff]
        %v249 = vld [vmem:[%s239] sm:$0xff]
        %v250 = vld [vmem:[%s239 + $0x8] sm:$0xff]
        %v251 = vld [vmem:[%s239 + $0x10] sm:$0xff]
        %v252 = vld [vmem:[%s239 + $0x18] sm:$0xff]
        %v253 = vlaneseq
        %v254 = vand.u32 %v253, 127
        %v255 = vsub.s32 31, %v254
        loop: start=0, step=1, limit=8
        $region33: #{tpu_custom_call.1} parent=31 // loop_pre_header
          _
        $region34: #{tpu_custom_call.1} parent=31 // loop_header
          %s257 = sphi 0, %s261
          %p258 = scmp.ge.s32.totalorder %s257, 8
          %v262 = vphi 1e+10, %v285
          %s263 = sphi 0, %s307
        $region35: #{tpu_custom_call.1} parent=31 // loop_header_branch
          %260 = sbr.rel (%p258) target = $region39
        $region36: #{tpu_custom_call.1} parent=31 // loop_body
          %v264 = vstv %s263
          %vm265 = vcmp.eq.s32.totalorder %v254, %v264
          %v266 = vsel %vm265, 1, 0
          %v267 = vcvt.s32.f32 %v266
          %s268 = scalar_lea.vmem [#allocation2], %s257
          %vm269 = vcmask 253952
          %270 = vst.msk [vmem:[%s268] sm:$0x1] %vm269, %v267
          %v271 = vmul.f32 %v244, %v267
          %vm272 = vcmask 256000
          %v273 = vsel %vm272, %v271, 0.0
          %274 = vadd.xlane.f32.xlu0 %v273
          %v275 = vpop.xlane.xlu0 %274
          %v276 = vsub.f32 %v244, %v275
          %v277 = vmul.f32 %v276, %v276
          %v278 = vsel %vm272, %v277, 0.0
          %v279 = vrot.slane %v278, 4
          %v280 = vadd.f32 %v278, %v279
          %v281 = vrot.slane %v280, 2
          %v282 = vadd.f32 %v280, %v281
          %v283 = vrot.slane %v282, 1
          %v284 = vadd.f32 %v282, %v283
          %v285 = vmin.f32 %v262, %v284
          %v287 = vand.u32 %v285, 4294967264
          %v288 = vor.u32 %v287, %v255
          %vm289 = vcmask 261120
          %v290 = vsel %vm289, %v288, 2147483648
          %v291 = vand.u32 %v290, 65535
          %v292 = vshra.s32 %v290, 16
          %v293 = vcvt.s32.f32 %v291
          %v294 = vcvt.s32.f32 %v292
          %295 = vmax.xlane.f32.xlu0 %v294
          %v296 = vpop.xlane.xlu0 %295
          %vm297 = vcmp.eq.f32.partialorder %v294, %v296
          %v298 = vsel %vm297, %v293, -inf
          %299 = vmax.xlane.f32.xlu0 %v298
          %v300 = vpop.xlane.xlu0 %299
          %v301 = vcvt.f32.s32 %v300
          %v302 = vcvt.f32.s32 %v296
          %v303 = vshll.u32 %v302, 16
          %v304 = vadd.s32 %v303, %v301
          %s305 = vtos %v304
          %s306 = sand.u32 %s305, 31
          %s307 = ssub.s32 31, %s306
        $region37: #{tpu_custom_call.1} parent=31 // loop_footer
          %s261 = sadd.s32 1, %s257
        $region38: #{tpu_custom_call.1} parent=31 // loop_footer_branch
          %256 = sbr.rel target = $region34
        $region39: #{tpu_custom_call.1} parent=31 // loop_exit
          _
        %v308 = vld [vmem:[#allocation2] sm:$0xff]
        %vm309 = vcmask 261120
        %v311 = vsel %vm309, %v308, 0
        %313 = vmatprep.subr.mxu0 0.0
        %314 = vmatpush1.msra.mxu0 %v245
        %315 = vmatprep.subr.mxu0 0.0
        %316 = vmatpush1.msra.mxu0 %v246
        %317 = vmatprep.subr.mxu0 0.0
        %318 = vmatpush1.msra.mxu0 %v247
        %319 = vmatprep.subr.mxu0 0.0
        %320 = vmatpush1.msra.mxu0 %v248
        %321 = vmatprep.subr.mxu0 0.0
        %322 = vmatpush1.msra.mxu0 0.0
        %323 = vmatprep.subr.mxu0 0.0
        %324 = vmatpush1.msra.mxu0 0.0
        %325 = vmatprep.subr.mxu0 0.0
        %326 = vmatpush1.msra.mxu0 0.0
        %327 = vmatprep.subr.mxu0 0.0
        %328 = vmatpush1.msra.mxu0 0.0
        %329 = vmatprep.subr.mxu0 0.0
        %330 = vmatpush1.msra.mxu0 0.0
        %331 = vmatprep.subr.mxu0 0.0
        %332 = vmatpush1.msra.mxu0 0.0
        %333 = vmatprep.subr.mxu0 0.0
        %334 = vmatpush1.msra.mxu0 0.0
        %335 = vmatprep.subr.mxu0 0.0
        %336 = vmatpush1.msra.mxu0 0.0
        %337 = vmatprep.subr.mxu0 0.0
        %338 = vmatpush1.msra.mxu0 0.0
        %339 = vmatprep.subr.mxu0 0.0
        %340 = vmatpush1.msra.mxu0 0.0
        %341 = vmatprep.subr.mxu0 0.0
        %342 = vmatpush1.msra.mxu0 0.0
        %343 = vmatprep.subr.mxu0 0.0
        %344 = vmatpush1.msra.mxu0 0.0
        %345 = vmatprep.subr.mxu0 0.0
        %346 = vmatpush1.msra.mxu0 0.0
        %347 = vmatprep.subr.mxu0 0.0
        %348 = vmatpush1.msra.mxu0 0.0
        %349 = vmatprep.subr.mxu0 0.0
        %350 = vmatpush1.msra.mxu0 0.0
        %351 = vmatprep.subr.mxu0 0.0
        %352 = vmatpush1.msra.mxu0 0.0
        %353 = vmatprep.subr.mxu0 0.0
        %354 = vmatpush1.msra.mxu0 0.0
        %355 = vmatprep.subr.mxu0 0.0
        %356 = vmatpush1.msra.mxu0 0.0
        %357 = vmatprep.subr.mxu0 0.0
        %358 = vmatpush1.msra.mxu0 0.0
        %359 = vmatprep.subr.mxu0 0.0
        %360 = vmatpush1.msra.mxu0 0.0
        %361 = vmatprep.subr.mxu0 0.0
        %362 = vmatpush1.msra.mxu0 0.0
        %363 = vmatprep.subr.mxu0 0.0
        %364 = vmatpush1.msra.mxu0 0.0
        %365 = vmatprep.subr.mxu0 0.0
        %366 = vmatpush1.msra.mxu0 0.0
        %367 = vmatprep.subr.mxu0 0.0
        %368 = vmatpush1.msra.mxu0 0.0
        %369 = vmatprep.subr.mxu0 0.0
        %370 = vmatpush1.msra.mxu0 0.0
        %371 = vmatprep.subr.mxu0 0.0
        %372 = vmatpush1.msra.mxu0 0.0
        %373 = vmatprep.subr.mxu0 0.0
        %374 = vmatpush1.msra.mxu0 0.0
        %375 = vmatprep.subr.mxu0 0.0
        %376 = vmatpush1.msra.mxu0 0.0
        %377 = vmatprep.mubr.f32.mxu0 0.0
        %378 = vmatmul.mubr.f32.gmra.mrb[0].mxu0 %v311
        %v379 = vpop.f32.mrb[0].mxu0
        %v380 = vadd.f32 0.0, %v379
        %v381 = vpop.f32.mrb[0].mxu0
        %382 = vdwg.mxu0
        %383 = vmatprep.subr.mxu0 0.0
        %384 = vmatpush1.msra.mxu0 %v249
        %385 = vmatprep.subr.mxu0 0.0
        %386 = vmatpush1.msra.mxu0 %v250
        %387 = vmatprep.subr.mxu0 0.0
        %388 = vmatpush1.msra.mxu0 %v251
        %389 = vmatprep.subr.mxu0 0.0
        %390 = vmatpush1.msra.mxu0 %v252
        %391 = vmatprep.subr.mxu0 0.0
        %392 = vmatpush1.msra.mxu0 0.0
        %393 = vmatprep.subr.mxu0 0.0
        %394 = vmatpush1.msra.mxu0 0.0
        %395 = vmatprep.subr.mxu0 0.0
        %396 = vmatpush1.msra.mxu0 0.0
        %397 = vmatprep.subr.mxu0 0.0
        %398 = vmatpush1.msra.mxu0 0.0
        %399 = vmatprep.subr.mxu0 0.0
        %400 = vmatpush1.msra.mxu0 0.0
        %401 = vmatprep.subr.mxu0 0.0
        %402 = vmatpush1.msra.mxu0 0.0
        %403 = vmatprep.subr.mxu0 0.0
        %404 = vmatpush1.msra.mxu0 0.0
        %405 = vmatprep.subr.mxu0 0.0
        %406 = vmatpush1.msra.mxu0 0.0
        %407 = vmatprep.subr.mxu0 0.0
        %408 = vmatpush1.msra.mxu0 0.0
        %409 = vmatprep.subr.mxu0 0.0
        %410 = vmatpush1.msra.mxu0 0.0
        %411 = vmatprep.subr.mxu0 0.0
        %412 = vmatpush1.msra.mxu0 0.0
        %413 = vmatprep.subr.mxu0 0.0
        %414 = vmatpush1.msra.mxu0 0.0
        %415 = vmatprep.subr.mxu0 0.0
        %416 = vmatpush1.msra.mxu0 0.0
        %417 = vmatprep.subr.mxu0 0.0
        %418 = vmatpush1.msra.mxu0 0.0
        %419 = vmatprep.subr.mxu0 0.0
        %420 = vmatpush1.msra.mxu0 0.0
        %421 = vmatprep.subr.mxu0 0.0
        %422 = vmatpush1.msra.mxu0 0.0
        %423 = vmatprep.subr.mxu0 0.0
        %424 = vmatpush1.msra.mxu0 0.0
        %425 = vmatprep.subr.mxu0 0.0
        %426 = vmatpush1.msra.mxu0 0.0
        %427 = vmatprep.subr.mxu0 0.0
        %428 = vmatpush1.msra.mxu0 0.0
        %429 = vmatprep.subr.mxu0 0.0
        %430 = vmatpush1.msra.mxu0 0.0
        %431 = vmatprep.subr.mxu0 0.0
        %432 = vmatpush1.msra.mxu0 0.0
        %433 = vmatprep.subr.mxu0 0.0
        %434 = vmatpush1.msra.mxu0 0.0
        %435 = vmatprep.subr.mxu0 0.0
        %436 = vmatpush1.msra.mxu0 0.0
        %437 = vmatprep.subr.mxu0 0.0
        %438 = vmatpush1.msra.mxu0 0.0
        %439 = vmatprep.subr.mxu0 0.0
        %440 = vmatpush1.msra.mxu0 0.0
        %441 = vmatprep.subr.mxu0 0.0
        %442 = vmatpush1.msra.mxu0 0.0
        %443 = vmatprep.subr.mxu0 0.0
        %444 = vmatpush1.msra.mxu0 0.0
        %445 = vmatprep.subr.mxu0 0.0
        %446 = vmatpush1.msra.mxu0 0.0
        %447 = vmatprep.mubr.f32.mxu0 0.0
        %448 = vmatmul.mubr.f32.gmra.mrb[0].mxu0 %v311
        %v449 = vpop.f32.mrb[0].mxu0
        %v450 = vadd.f32 0.0, %v449
        %v451 = vpop.f32.mrb[0].mxu0
        %452 = vdwg.mxu0
        %vm453 = vcmask 23552
        %454 = vst.msk [vmem:[%s243] sm:$0xff] %vm453, %v380
        %v455 = vmul.f32 %v244, %v244
        %vm456 = vcmask 256000
        %v457 = vsel %vm456, %v455, 0.0
        %v458 = vrot.slane %v457, 4
        %v459 = vadd.f32 %v457, %v458
        %v460 = vrot.slane %v459, 2
        %v461 = vadd.f32 %v459, %v460
        %v462 = vrot.slane %v461, 1
        %v463 = vadd.f32 %v461, %v462
        %v464 = vmul.f32 %v380, %v380
        %v465 = vsel %vm453, %v464, 0.0
        %466 = vadd.xlane.f32.xlu0 %v465
        %v467 = vpop.xlane.xlu0 %466
        %v468 = vsel %vm453, %v380, %v467
        %vm469 = vcmask 31744
        %v470 = vsel %vm469, %v468, 1.0
        %v471 = vmul.f32 %v244, -2.0
        %vm472 = vcmask 1042432
        %v473 = vsel %vm472, %v471, 1.0
        %vm474 = vcmask 1043456
        %v475 = vsel %vm474, %v473, %v463
        %vm476 = vcmask 39936
        %v478 = vsel %vm476, %v470, 0
        %vm480 = vcmask 1044480
        %v482 = vsel %vm480, %v475, 0
        %484 = vmatprep.subr.mxu0 0.0
        %485 = vmatpush1.msra.mxu0 %v482
        %486 = vmatprep.subr.mxu0 0.0
        %487 = vmatpush1.msra.mxu0 0.0
        %488 = vmatprep.subr.mxu0 0.0
        %489 = vmatpush1.msra.mxu0 0.0
        %490 = vmatprep.subr.mxu0 0.0
        %491 = vmatpush1.msra.mxu0 0.0
        %492 = vmatprep.subr.mxu0 0.0
        %493 = vmatpush1.msra.mxu0 0.0
        %494 = vmatprep.subr.mxu0 0.0
        %495 = vmatpush1.msra.mxu0 0.0
        %496 = vmatprep.subr.mxu0 0.0
        %497 = vmatpush1.msra.mxu0 0.0
        %498 = vmatprep.subr.mxu0 0.0
        %499 = vmatpush1.msra.mxu0 0.0
        %500 = vmatprep.subr.mxu0 0.0
        %501 = vmatpush1.msra.mxu0 0.0
        %502 = vmatprep.subr.mxu0 0.0
        %503 = vmatpush1.msra.mxu0 0.0
        %504 = vmatprep.subr.mxu0 0.0
        %505 = vmatpush1.msra.mxu0 0.0
        %506 = vmatprep.subr.mxu0 0.0
        %507 = vmatpush1.msra.mxu0 0.0
        %508 = vmatprep.subr.mxu0 0.0
        %509 = vmatpush1.msra.mxu0 0.0
        %510 = vmatprep.subr.mxu0 0.0
        %511 = vmatpush1.msra.mxu0 0.0
        %512 = vmatprep.subr.mxu0 0.0
        %513 = vmatpush1.msra.mxu0 0.0
        %514 = vmatprep.subr.mxu0 0.0
        %515 = vmatpush1.msra.mxu0 0.0
        %516 = vmatprep.subr.mxu0 0.0
        %517 = vmatpush1.msra.mxu0 0.0
        %518 = vmatprep.subr.mxu0 0.0
        %519 = vmatpush1.msra.mxu0 0.0
        %520 = vmatprep.subr.mxu0 0.0
        %521 = vmatpush1.msra.mxu0 0.0
        %522 = vmatprep.subr.mxu0 0.0
        %523 = vmatpush1.msra.mxu0 0.0
        %524 = vmatprep.subr.mxu0 0.0
        %525 = vmatpush1.msra.mxu0 0.0
        %526 = vmatprep.subr.mxu0 0.0
        %527 = vmatpush1.msra.mxu0 0.0
        %528 = vmatprep.subr.mxu0 0.0
        %529 = vmatpush1.msra.mxu0 0.0
        %530 = vmatprep.subr.mxu0 0.0
        %531 = vmatpush1.msra.mxu0 0.0
        %532 = vmatprep.subr.mxu0 0.0
        %533 = vmatpush1.msra.mxu0 0.0
        %534 = vmatprep.subr.mxu0 0.0
        %535 = vmatpush1.msra.mxu0 0.0
        %536 = vmatprep.subr.mxu0 0.0
        %537 = vmatpush1.msra.mxu0 0.0
        %538 = vmatprep.subr.mxu0 0.0
        %539 = vmatpush1.msra.mxu0 0.0
        %540 = vmatprep.subr.mxu0 0.0
        %541 = vmatpush1.msra.mxu0 0.0
        %542 = vmatprep.subr.mxu0 0.0
        %543 = vmatpush1.msra.mxu0 0.0
        %544 = vmatprep.subr.mxu0 0.0
        %545 = vmatpush1.msra.mxu0 0.0
        %546 = vmatprep.subr.mxu0 0.0
        %547 = vmatpush1.msra.mxu0 0.0
        %548 = vmatprep.mubr.f32.mxu0 0.0
        %549 = vmatmul.mubr.f32.gmra.mrb[0].mxu0 %v478
        %v550 = vpop.f32.mrb[0].mxu0
        %v551 = vadd.f32 0.0, %v550
        %v552 = vpop.f32.mrb[0].mxu0
        %553 = vdwg.mxu0
        %v554 = vmax.f32 %v551, 0.0
        %v556 = vand.u32 %v554, 4294967264
        %v557 = vor.u32 %v556, %v254
        %v558 = vsel %vm309, %v557, 2147483647
        %v559 = vand.u32 %v558, 65535
        %v560 = vshra.s32 %v558, 16
        %v561 = vcvt.s32.f32 %v559
        %v562 = vcvt.s32.f32 %v560
        %563 = vmin.xlane.f32.xlu0 %v562
        %v564 = vpop.xlane.xlu0 %563
        %vm565 = vcmp.eq.f32.partialorder %v562, %v564
        %v566 = vsel %vm565, %v561, inf
        %567 = vmin.xlane.f32.xlu0 %v566
        %v568 = vpop.xlane.xlu0 %567
        %v569 = vcvt.f32.s32 %v568
        %v570 = vcvt.f32.s32 %v564
        %v571 = vshll.u32 %v570, 16
        %v572 = vadd.s32 %v571, %v569
        %vm573 = vcmp.eq.s32.totalorder %v557, %v572
        %v574 = vsel %vm573, 1, 0
        %v575 = vcvt.s32.f32 %v574
        %576 = vst.msk [vmem:[#allocation3] sm:$0xff] %vm309, %v575
        %v577 = vsel %vm573, 2147483647, %v557
        %v578 = vsel %vm309, %v577, 2147483647
        %v579 = vand.u32 %v578, 65535
        %v580 = vshra.s32 %v578, 16
        %v581 = vcvt.s32.f32 %v579
        %v582 = vcvt.s32.f32 %v580
        %583 = vmin.xlane.f32.xlu0 %v582
        %v584 = vpop.xlane.xlu0 %583
        %vm585 = vcmp.eq.f32.partialorder %v582, %v584
        %v586 = vsel %vm585, %v581, inf
        %587 = vmin.xlane.f32.xlu0 %v586
        %v588 = vpop.xlane.xlu0 %587
        %v589 = vcvt.f32.s32 %v588
        %v590 = vcvt.f32.s32 %v584
        %v591 = vshll.u32 %v590, 16
        %v592 = vadd.s32 %v591, %v589
        %vm593 = vcmp.eq.s32.totalorder %v577, %v592
        %v594 = vsel %vm593, 1, 0
        %v595 = vcvt.s32.f32 %v594
        %596 = vst.msk [vmem:[#allocation3 + $0x8] sm:$0xff] %vm309, %v595
        %v597 = vsel %vm593, 2147483647, %v577
        %v598 = vsel %vm309, %v597, 2147483647
        %v599 = vand.u32 %v598, 65535
        %v600 = vshra.s32 %v598, 16
        %v601 = vcvt.s32.f32 %v599
        %v602 = vcvt.s32.f32 %v600
        %603 = vmin.xlane.f32.xlu0 %v602
        %v604 = vpop.xlane.xlu0 %603
        %vm605 = vcmp.eq.f32.partialorder %v602, %v604
        %v606 = vsel %vm605, %v601, inf
        %607 = vmin.xlane.f32.xlu0 %v606
        %v608 = vpop.xlane.xlu0 %607
        %v609 = vcvt.f32.s32 %v608
        %v610 = vcvt.f32.s32 %v604
        %v611 = vshll.u32 %v610, 16
        %v612 = vadd.s32 %v611, %v609
        %vm613 = vcmp.eq.s32.totalorder %v597, %v612
        %v614 = vsel %vm613, 1, 0
        %v615 = vcvt.s32.f32 %v614
        %616 = vst.msk [vmem:[#allocation3 + $0x10] sm:$0xff] %vm309, %v615
        %v617 = vsel %vm613, 2147483647, %v597
        %v618 = vsel %vm309, %v617, 2147483647
        %v619 = vand.u32 %v618, 65535
        %v620 = vshra.s32 %v618, 16
        %v621 = vcvt.s32.f32 %v619
        %v622 = vcvt.s32.f32 %v620
        %623 = vmin.xlane.f32.xlu0 %v622
        %v624 = vpop.xlane.xlu0 %623
        %vm625 = vcmp.eq.f32.partialorder %v622, %v624
        %v626 = vsel %vm625, %v621, inf
        %627 = vmin.xlane.f32.xlu0 %v626
        %v628 = vpop.xlane.xlu0 %627
        %v629 = vcvt.f32.s32 %v628
        %v630 = vcvt.f32.s32 %v624
        %v631 = vshll.u32 %v630, 16
        %v632 = vadd.s32 %v631, %v629
        %vm633 = vcmp.eq.s32.totalorder %v617, %v632
        %v634 = vsel %vm633, 1, 0
        %v635 = vcvt.s32.f32 %v634
        %636 = vst.msk [vmem:[#allocation3 + $0x18] sm:$0xff] %vm309, %v635
        %v637 = vld [vmem:[#allocation3] sm:$0xff]
        %v638 = vld [vmem:[#allocation3 + $0x8] sm:$0xff]
        %v639 = vld [vmem:[#allocation3 + $0x10] sm:$0xff]
        %v640 = vld [vmem:[#allocation3 + $0x18] sm:$0xff]
        %v642 = vsel %vm309, %v637, 0
        %v645 = vsel %vm309, %v638, 0
        %v648 = vsel %vm309, %v639, 0
        %v651 = vsel %vm309, %v640, 0
        %653 = vmatprep.subr.mxu0 0.0
        %654 = vmatpush1.msra.mxu0 %v249
        %655 = vmatprep.subr.mxu0 0.0
        %656 = vmatpush1.msra.mxu0 %v250
        %657 = vmatprep.subr.mxu0 0.0
        %658 = vmatpush1.msra.mxu0 %v251
        %659 = vmatprep.subr.mxu0 0.0
        %660 = vmatpush1.msra.mxu0 %v252
        %661 = vmatprep.subr.mxu0 0.0
        %662 = vmatpush1.msra.mxu0 0.0
        %663 = vmatprep.subr.mxu0 0.0
        %664 = vmatpush1.msra.mxu0 0.0
        %665 = vmatprep.subr.mxu0 0.0
        %666 = vmatpush1.msra.mxu0 0.0
        %667 = vmatprep.subr.mxu0 0.0
        %668 = vmatpush1.msra.mxu0 0.0
        %669 = vmatprep.subr.mxu0 0.0
        %670 = vmatpush1.msra.mxu0 0.0
        %671 = vmatprep.subr.mxu0 0.0
        %672 = vmatpush1.msra.mxu0 0.0
        %673 = vmatprep.subr.mxu0 0.0
        %674 = vmatpush1.msra.mxu0 0.0
        %675 = vmatprep.subr.mxu0 0.0
        %676 = vmatpush1.msra.mxu0 0.0
        %677 = vmatprep.subr.mxu0 0.0
        %678 = vmatpush1.msra.mxu0 0.0
        %679 = vmatprep.subr.mxu0 0.0
        %680 = vmatpush1.msra.mxu0 0.0
        %681 = vmatprep.subr.mxu0 0.0
        %682 = vmatpush1.msra.mxu0 0.0
        %683 = vmatprep.subr.mxu0 0.0
        %684 = vmatpush1.msra.mxu0 0.0
        %685 = vmatprep.subr.mxu0 0.0
        %686 = vmatpush1.msra.mxu0 0.0
        %687 = vmatprep.subr.mxu0 0.0
        %688 = vmatpush1.msra.mxu0 0.0
        %689 = vmatprep.subr.mxu0 0.0
        %690 = vmatpush1.msra.mxu0 0.0
        %691 = vmatprep.subr.mxu0 0.0
        %692 = vmatpush1.msra.mxu0 0.0
        %693 = vmatprep.subr.mxu0 0.0
        %694 = vmatpush1.msra.mxu0 0.0
        %695 = vmatprep.subr.mxu0 0.0
        %696 = vmatpush1.msra.mxu0 0.0
        %697 = vmatprep.subr.mxu0 0.0
        %698 = vmatpush1.msra.mxu0 0.0
        %699 = vmatprep.subr.mxu0 0.0
        %700 = vmatpush1.msra.mxu0 0.0
        %701 = vmatprep.subr.mxu0 0.0
        %702 = vmatpush1.msra.mxu0 0.0
        %703 = vmatprep.subr.mxu0 0.0
        %704 = vmatpush1.msra.mxu0 0.0
        %705 = vmatprep.subr.mxu0 0.0
        %706 = vmatpush1.msra.mxu0 0.0
        %707 = vmatprep.subr.mxu0 0.0
        %708 = vmatpush1.msra.mxu0 0.0
        %709 = vmatprep.subr.mxu0 0.0
        %710 = vmatpush1.msra.mxu0 0.0
        %711 = vmatprep.subr.mxu0 0.0
        %712 = vmatpush1.msra.mxu0 0.0
        %713 = vmatprep.subr.mxu0 0.0
        %714 = vmatpush1.msra.mxu0 0.0
        %715 = vmatprep.subr.mxu0 0.0
        %716 = vmatpush1.msra.mxu0 0.0
        %717 = vmatprep.mubr.f32.mxu0 0.0
        %718 = vmatmul.mubr.f32.gmra.mrb[0].mxu0 %v642
        %v719 = vpop.f32.mrb[0].mxu0
        %v720 = vadd.f32 0.0, %v719
        %v721 = vpop.f32.mrb[0].mxu0
        %722 = vmatprep.mubr.f32.mxu0 0.0
        %723 = vmatmul.mubr.f32.gmra.mrb[0].mxu0 %v645
        %v724 = vpop.f32.mrb[0].mxu0
        %v725 = vadd.f32 0.0, %v724
        %v726 = vpop.f32.mrb[0].mxu0
        %727 = vmatprep.mubr.f32.mxu0 0.0
        %728 = vmatmul.mubr.f32.gmra.mrb[0].mxu0 %v648
        %v729 = vpop.f32.mrb[0].mxu0
        %v730 = vadd.f32 0.0, %v729
        %v731 = vpop.f32.mrb[0].mxu0
        %732 = vmatprep.mubr.f32.mxu0 0.0
        %733 = vmatmul.mubr.f32.gmra.mrb[0].mxu0 %v651
        %v734 = vpop.f32.mrb[0].mxu0
        %v735 = vadd.f32 0.0, %v734
        %v736 = vpop.f32.mrb[0].mxu0
        %737 = vdwg.mxu0
        %v738 = vsub.f32 %v720, %v450
        %v739 = vsub.f32 %v725, %v450
        %v740 = vsub.f32 %v730, %v450
        %v741 = vsub.f32 %v735, %v450
        %743 = vrot.lane.b32.xlu0 %v450, 8
        %v744 = vpop.permute.xlu0 %743
        %747 = vrot.lane.b32.xlu0 %v739, 16
        %v748 = vpop.permute.xlu0 %747
        %750 = vrot.lane.b32.xlu0 %v450, 24
        %v751 = vpop.permute.xlu0 %750
        %754 = vrot.lane.b32.xlu0 %v740, 32
        %v755 = vpop.permute.xlu0 %754
        %757 = vrot.lane.b32.xlu0 %v450, 40
        %v758 = vpop.permute.xlu0 %757
        %761 = vrot.lane.b32.xlu0 %v741, 48
        %v762 = vpop.permute.xlu0 %761
        %764 = vrot.lane.b32.xlu0 %v450, 56
        %v765 = vpop.permute.xlu0 %764
        %vm767 = vcmask 64512
        %v768 = vsel %vm767, %v738, %v744
        %vm769 = vcmask 130048
        %v770 = vsel %vm769, %v768, %v748
        %vm771 = vcmask 195584
        %v772 = vsel %vm771, %v770, %v751
        %v773 = vsel %vm309, %v772, %v755
        %vm774 = vcmask 326656
        %v775 = vsel %vm774, %v773, %v758
        %vm776 = vcmask 392192
        %v777 = vsel %vm776, %v775, %v762
        %vm778 = vcmask 457728
        %v779 = vsel %vm778, %v777, %v765
        %vm780 = vcmask 523264
        %781 = vst.msk [vmem:[%s225] sm:$0xff] %vm780, %v779
        %p782 = scmp.lt.s32.totalorder %s19, 1
        %s783 = scalar_select %p782, %s19, 1
        %s784 = smul.addr %s783, 8
        %s785 = scalar_lea.vmem %s3, %s784
        %s786 = sand.u32 %s131, 1
        %s787 = scalar_lea.sflag [#allocation5], %s786
        %s788 = sand.u32 %s131, 1
        %s789 = smul.addr %s788, 8
        %s790 = scalar_lea.vmem [#allocation4], %s789
        // Predicated region
        $region40: #{tpu_custom_call.1} parent=31 // pred_check
          %p791 = pneg %p115
        $region41: #{tpu_custom_call.1} parent=31 // pred_check_branch
          %793 = sbr.rel (%p791) target = $region43
        $region42: #{tpu_custom_call.1} parent=31 // pred_region
          _
        $region43: #{tpu_custom_call.1} parent=31 // pred_fallthru
          _
        // Predicated region
        $region44: #{tpu_custom_call.1} parent=31 // pred_check
          %p794 = pneg %p141
        $region45: #{tpu_custom_call.1} parent=31 // pred_check_branch
          %796 = sbr.rel (%p794) target = $region47
        $region46: #{tpu_custom_call.1} parent=31 // pred_region
          %s798 = ssub.s32 128, 128
          %799 = vsyncadd %s787, %s798
          %s800 = smul.addr %s19, 128
          %s801 = scalar_lea.hbm %s4, %s800
          %s803 = sshll.u32 %s790, 4
          %s804 = int_to_ptr.vmem [resolvable:$true] %s803
          %806 = dma.vmem_to_hbm [thread:$0]  %s804, 128, %s801, %s787
        $region47: #{tpu_custom_call.1} parent=31 // pred_fallthru
          _
      $region32: #{tpu_custom_call.1} parent=5 // pred_fallthru
        _
      %p807 = scmp.le.s32.totalorder 2, %s14
      // Predicated region
      $region48: #{tpu_custom_call.1} parent=5 // pred_check
        %p808 = pneg %p807
      $region49: #{tpu_custom_call.1} parent=5 // pred_check_branch
        %810 = sbr.rel (%p808) target = $region51
      $region50: #{tpu_custom_call.1} parent=5 // pred_region
        %s811 = ssub.s32 %s14, 2
        // Predicated region
        $region52: #{tpu_custom_call.1} parent=50 // pred_check
          %p812 = pneg %p121
        $region53: #{tpu_custom_call.1} parent=50 // pred_check_branch
          %814 = sbr.rel (%p812) target = $region55
        $region54: #{tpu_custom_call.1} parent=50 // pred_region
          %p815 = scmp.lt.s32.totalorder %s20, 1
          %s816 = scalar_select %p815, %s20, 1
          %s817 = smul.addr %s816, 8
          %s818 = scalar_lea.vmem %s3, %s817
        $region55: #{tpu_custom_call.1} parent=50 // pred_fallthru
          _
        // Predicated region
        $region56: #{tpu_custom_call.1} parent=50 // pred_check
          %p819 = pneg %p147
        $region57: #{tpu_custom_call.1} parent=50 // pred_check_branch
          %821 = sbr.rel (%p819) target = $region59
        $region58: #{tpu_custom_call.1} parent=50 // pred_region
          %s822 = sand.u32 %s132, 1
          %s823 = scalar_lea.sflag [#allocation5], %s822
          %s824 = sand.u32 %s132, 1
          %s825 = smul.addr %s824, 8
          %s826 = scalar_lea.vmem [#allocation4], %s825
          %827 = dma.done %s823, 128
        $region59: #{tpu_custom_call.1} parent=50 // pred_fallthru
          _
      $region51: #{tpu_custom_call.1} parent=5 // pred_fallthru
        _
    $region6: #{tpu_custom_call.1} parent=1 // loop_footer
      %s18 = sadd.s32 1, %s14
    $region7: #{tpu_custom_call.1} parent=1 // loop_footer_branch
      %13 = sbr.rel target = $region3
    $region8: #{tpu_custom_call.1} parent=1 // loop_exit
      _
    %828 = vsyncpa [#allocation5], 1
    %s829 = scalar_lea.sflag [#allocation5], 1
    %830 = vsyncpa %s829, 1

</llo_original>
